<compile_context>
chip_gen: v6e
topology: v6e:2x2x1
jax: 0.10.0
libtpu: 0.0.40
codegen_flags: <defaults>
</compile_context>

<pallas_src>
import functools

import jax
import jax.numpy as jnp
import numpy as np
from jax import lax
from jax.experimental import pallas as pl
from jax.experimental.pallas import tpu as pltpu

_LANE = 128                        # TPU lane width
_SUBLANE = 8                       # TPU sublane width (f32)
_TARGET_BLOCK_BYTES = 4 << 20      # ~4 MiB/block -> ~16 MiB with 2x-buffered in+out
_VMEM_LIMIT_BYTES = 32 << 20       # safe on all generations; raises v5e's 16 MiB default


def _ranger_kernel(x_ref, o_ref, *, bnd_low, bnd_up, valid_cols):
    """One block = (row_tile, padded_cols); each row is one full feature map."""
    x = x_ref[...]

    if valid_cols is None:
        x_max_src = x
        x_min_src = x
    else:
        # Column axis was padded to a multiple of 128 for lane-dense stores;
        # exclude the pad lanes from the per-row reductions.
        lane = lax.broadcasted_iota(jnp.int32, x.shape, dimension=1)
        valid = lane < valid_cols
        x_max_src = jnp.where(valid, x, -jnp.inf)
        x_min_src = jnp.where(valid, x, jnp.inf)

    row_max = jnp.max(x_max_src, axis=-1, keepdims=True)
    row_min = jnp.min(x_min_src, axis=-1, keepdims=True)

    # Exact per-row divide on a (row_tile, 1) column; full-block work stays on
    # the VPU (mul + add), off the single EUP slot.
    scale = (bnd_up - bnd_low) / (row_max - row_min)
    x_resc = (x - row_min) * scale + bnd_low

    out = jnp.where(x > bnd_up, x_resc, x)         # masked_scatter(mask_up, x_resc)
    out = jnp.where(out < bnd_low, bnd_low, out)   # masked_fill(mask_low, bnd_low)
    o_ref[...] = out


def _pick_row_tile(rows, padded_cols):
    """Pick a multiple-of-8 row tile giving ~4 MiB blocks without collapsing the grid."""
    bytes_per_row = padded_cols * 4  # f32
    t = max(_SUBLANE, (_TARGET_BLOCK_BYTES // bytes_per_row) // _SUBLANE * _SUBLANE)
    t = min(t, 1024)                                  # diminishing returns past ~1K rows
    t = min(t, pl.cdiv(rows, _SUBLANE) * _SUBLANE)    # don't exceed the (rounded-up) array
    # Keep >= 2 grid blocks on big inputs so the "parallel" axis can feed both
    # TensorCores on v7x.
    if rows >= 16 * _SUBLANE:
        t = min(t, max(_SUBLANE, pl.cdiv(rows, 2) // _SUBLANE * _SUBLANE))
    return t


def ranger_fmap_rescale(x, bnds):
    """Pallas implementation of Ranger_FmapRescale.forward."""
    # Inactive-path semantics of the reference module (wrong bounds / dtype).
    if (bnds is None or len(bnds) < 2 or bnds[0] is None or bnds[1] is None
            or x.dtype != jnp.float32 or x.ndim < 2):
        return x

    bnd_low = float(bnds[0])
    bnd_up = float(bnds[1])

    orig_shape = x.shape
    if x.ndim > 2:
        rows = int(np.prod(orig_shape[:2]))   # one row per (n, c) feature map
        cols = int(np.prod(orig_shape[2:]))
    else:
        rows, cols = int(orig_shape[0]), int(orig_shape[1])

    x2d = x.reshape(rows, cols)

    # Lane-dense output: pad the column axis to a multiple of 128 only when
    # necessary (pad lanes masked in-kernel, sliced off afterwards).  The row
    # axis is never padded: the last grid block simply overhangs.
    padded_cols = pl.cdiv(cols, _LANE) * _LANE
    if padded_cols != cols:
        x2d = jnp.pad(x2d, ((0, 0), (0, padded_cols - cols)))
        valid_cols = cols
    else:
        valid_cols = None

    row_tile = _pick_row_tile(rows, padded_cols)
    grid = (pl.cdiv(rows, row_tile),)

    # TODO(synk): for very large H*W (a single 8-row block exceeding the VMEM
    # budget) add a two-pass column-split path (pass 1: per-row min/max into
    # scratch, pass 2: apply the rescale).

    kernel = functools.partial(_ranger_kernel, bnd_low=bnd_low, bnd_up=bnd_up,
                               valid_cols=valid_cols)

    out2d = pl.pallas_call(
        kernel,
        out_shape=jax.ShapeDtypeStruct((rows, padded_cols), x.dtype),
        grid_spec=pltpu.PrefetchScalarGridSpec(
            num_scalar_prefetch=0,
            grid=grid,
            in_specs=[pl.BlockSpec((row_tile, padded_cols), lambda i: (i, 0))],
            out_specs=pl.BlockSpec((row_tile, padded_cols), lambda i: (i, 0)),
        ),
        compiler_params=pltpu.CompilerParams(
            dimension_semantics=("parallel",),
            vmem_limit_bytes=_VMEM_LIMIT_BYTES),
    )(x2d)

    if padded_cols != cols:
        out2d = out2d[:, :cols]
    return out2d.reshape(orig_shape)


def _reference_jax(x, bnds):
    """Pure-JAX reference mirroring the PyTorch forward (for verification)."""
    bnd_low, bnd_up = float(bnds[0]), float(bnds[1])
    orig_shape = x.shape
    rows = int(np.prod(orig_shape[:2])) if x.ndim > 2 else orig_shape[0]
    cols = int(np.prod(orig_shape[2:])) if x.ndim > 2 else orig_shape[1]
    x2d = x.reshape(rows, cols)
    fmax = jnp.max(x2d, axis=1, keepdims=True)
    fmin = jnp.min(x2d, axis=1, keepdims=True)
    x_resc = (x2d - fmin) / (fmax - fmin) * (bnd_up - bnd_low) + bnd_low
    out = jnp.where(x2d > bnd_up, x_resc, x2d)
    out = jnp.where(out < bnd_low, bnd_low, out)
    return out.reshape(orig_shape)


if __name__ == "__main__":
    bnds = np.array([-1.0, 2.0], dtype=np.float32)  # deterministic "weights"

    # 4D NCHW case (the module's primary use); scale so some values violate bounds.
    x = 3.0 * jax.random.normal(jax.random.PRNGKey(0), (2, 4, 16, 16),
                                dtype=jnp.float32)
    out = jax.block_until_ready(ranger_fmap_rescale(x, bnds))
    np.testing.assert_allclose(np.asarray(out), np.asarray(_reference_jax(x, bnds)),
                               rtol=1e-5, atol=1e-6)

    # 2D case.
    x2 = 3.0 * jax.random.normal(jax.random.PRNGKey(1), (8, 128),
                                 dtype=jnp.float32)
    out2 = jax.block_until_ready(ranger_fmap_rescale(x2, bnds))
    np.testing.assert_allclose(np.asarray(out2), np.asarray(_reference_jax(x2, bnds)),
                               rtol=1e-5, atol=1e-6)

    # 4D case with H*W not a multiple of 128 (exercises the lane-pad + mask path).
    x3 = 3.0 * jax.random.normal(jax.random.PRNGKey(2), (2, 3, 14, 14),
                                 dtype=jnp.float32)
    out3 = jax.block_until_ready(ranger_fmap_rescale(x3, bnds))
    np.testing.assert_allclose(np.asarray(out3), np.asarray(_reference_jax(x3, bnds)),
                               rtol=1e-5, atol=1e-6)

    print("KERNEL_OK")
</pallas_src>

<mosaic_0001>
module attributes {stable_mosaic.version = 11 : i64} {
  func.func @_ranger_kernel(%arg0: i32, %arg1: memref<8x256xf32, #tpu.memory_space<vmem>>, %arg2: memref<8x256xf32, #tpu.memory_space<vmem>>) attributes {dimension_semantics = [#tpu.dimension_semantics<parallel>], iteration_bounds = array<i64: 1>, scalar_prefetch = 0 : i64, scratch_operands = 0 : i64, tpu.core_type = #tpu.core_type<tc>, window_params = [{transform_indices = @transform_0, window_bounds = array<i64: 8, 256>}, {transform_indices = @transform_1, window_bounds = array<i64: 8, 256>}]} {
    %c0 = arith.constant 0 : index
    %c0_0 = arith.constant 0 : index
    %0 = vector.load %arg1[%c0, %c0_0] : memref<8x256xf32, #tpu.memory_space<vmem>>, vector<8x256xf32>
    %cst = arith.constant dense<0xFF800000> : vector<8xf32>
    %1 = vector.multi_reduction <maximumf>, %0, %cst [1] : vector<8x256xf32> to vector<8xf32>
    %2 = vector.shape_cast %1 : vector<8xf32> to vector<8x1xf32>
    %cst_1 = arith.constant dense<0x7F800000> : vector<8xf32>
    %3 = vector.multi_reduction <minimumf>, %0, %cst_1 [1] : vector<8x256xf32> to vector<8xf32>
    %4 = vector.shape_cast %3 : vector<8xf32> to vector<8x1xf32>
    %5 = arith.subf %2, %4 : vector<8x1xf32>
    %cst_2 = arith.constant 3.000000e+00 : f32
    %6 = vector.broadcast %cst_2 : f32 to vector<8x1xf32>
    %7 = arith.divf %6, %5 : vector<8x1xf32>
    %8 = vector.broadcast %4 : vector<8x1xf32> to vector<8x256xf32>
    %9 = arith.subf %0, %8 : vector<8x256xf32>
    %10 = vector.broadcast %7 : vector<8x1xf32> to vector<8x256xf32>
    %11 = arith.mulf %9, %10 : vector<8x256xf32>
    %cst_3 = arith.constant -1.000000e+00 : f32
    %12 = vector.broadcast %cst_3 : f32 to vector<8x256xf32>
    %13 = arith.addf %11, %12 : vector<8x256xf32>
    %cst_4 = arith.constant 2.000000e+00 : f32
    %14 = vector.broadcast %cst_4 : f32 to vector<8x256xf32>
    %15 = arith.cmpf ogt, %0, %14 : vector<8x256xf32>
    %16 = arith.select %15, %13, %0 : vector<8x256xi1>, vector<8x256xf32>
    %cst_5 = arith.constant -1.000000e+00 : f32
    %17 = vector.broadcast %cst_5 : f32 to vector<8x256xf32>
    %18 = arith.cmpf olt, %16, %17 : vector<8x256xf32>
    %cst_6 = arith.constant -1.000000e+00 : f32
    %19 = vector.broadcast %cst_6 : f32 to vector<8x256xf32>
    %20 = arith.select %18, %19, %16 : vector<8x256xi1>, vector<8x256xf32>
    %c0_7 = arith.constant 0 : index
    %c0_8 = arith.constant 0 : index
    %21 = vector.load %arg2[%c0_7, %c0_8] : memref<8x256xf32, #tpu.memory_space<vmem>>, vector<8x256xf32>
    tpu.vector_store %arg2[%c0_7, %c0_8], %20 {strides = array<i32>} : memref<8x256xf32, #tpu.memory_space<vmem>>, vector<8x256xf32>,
    return
  }
  func.func @transform_0(%arg0: i32) -> (i32, i32) {
    %c0_i32 = arith.constant 0 : i32
    %c0_i32_0 = arith.constant 0 : i32
    return %arg0, %c0_i32 : i32, i32
  }
  func.func @transform_1(%arg0: i32) -> (i32, i32) {
    %c0_i32 = arith.constant 0 : i32
    %c0_i32_0 = arith.constant 0 : i32
    return %arg0, %c0_i32 : i32, i32
  }
}

</mosaic_0001>

<llo_original>
// kernel: tpu_custom_call.1
$region0: #{tpu_custom_call.1}
  #allocation0 [shape = 'u32[]', space=smem, size = 0x4, offset = 0x4, fixed_abs, tag = 'smem constant byte address 0x4 - core index']
  #allocation1 [shape = 'u32[144,128]{1,0:T(1,128)}', space=vmem, size = 0x12000, scoped, tag = 'internal scratch']
  %s0 = inlined_call_operand.hbm [shape: f32[8,256], index: 0, kind: input, shape index: {}]
  %s1 = inlined_call_operand.hbm [shape: f32[8,256], index: 1, kind: output, shape index: {}]
  %s2 = sld [smem:[#allocation0]]
  $region18: #{tpu_custom_call.1} parent=0
    _
  %s4 = ssub.s32 1, %s2
  %s5 = scalar_select 0, %s4, %s2
  $region1: #{tpu_custom_call.1} parent=0
    #allocation2 [shape = 'u8[8192]{0}', space=vmem, size = 0x2000, scoped, tag = 'input window, operand 0, single buffered']
    #allocation3 [shape = 's32[1]{0}', space=sflag, size = 0x4, scoped, tag = 'scoped memory for tpu_custom_call.1']
    #allocation4 [shape = 's32[1]{0}', space=sflag, size = 0x4, scoped, tag = 'scoped memory for tpu_custom_call.1']
    #allocation5 [shape = 'u8[8192]{0}', space=vmem, size = 0x2000, scoped, tag = 'output window, operand 0, single buffered']
    %6 = vsyncpa [#allocation3], 0
    %7 = vsyncpa [#allocation4], 0
    // Predicated region
    $region2: #{tpu_custom_call.1} parent=1 // pred_check
      _
    $region3: #{tpu_custom_call.1} parent=1 // pred_check_branch
      %9 = sbr.rel (0) target = $region5
    $region4: #{tpu_custom_call.1} parent=1 // pred_region
      %s11 = ssub.s32 256, 256
      %12 = vsyncadd [#allocation3], %s11
      %s14 = sshll.u32 [#allocation2], 4
      %s15 = int_to_ptr.vmem [resolvable:$true] %s14
      %17 = dma.hbm_to_vmem [thread:$0]  %s0, 256, %s15, [#allocation3]
    $region5: #{tpu_custom_call.1} parent=1 // pred_fallthru
      _
    // Predicated region
    $region6: #{tpu_custom_call.1} parent=1 // pred_check
      _
    $region7: #{tpu_custom_call.1} parent=1 // pred_check_branch
      %19 = sbr.rel (0) target = $region9
    $region8: #{tpu_custom_call.1} parent=1 // pred_region
      %20 = dma.done [#allocation3], 256
    $region9: #{tpu_custom_call.1} parent=1 // pred_fallthru
      _
    %v21 = vld [vmem:[#allocation2] sm:$0xff]
    %v22 = vld [vmem:[#allocation2 + $0x8] sm:$0xff]
    %v23 = vmax.f32 %v21, %v22
    %24 = vmax.xlane.f32.xlu0 %v23
    %v25 = vpop.xlane.xlu0 %24
    %v26 = vmin.f32 %v21, %v22
    %27 = vmin.xlane.f32.xlu0 %v26
    %v28 = vpop.xlane.xlu0 %27
    %v29 = vsub.f32 %v25, %v28
    %v30 = vrcp.pop %v29
    %v31 = vmul.f32 3.0, %v30
    %v32 = vsub.f32 %v21, %v28
    %v33 = vsub.f32 %v22, %v28
    %v34 = vmul.f32 %v32, %v31
    %v35 = vmul.f32 %v33, %v31
    %v36 = vadd.f32 %v34, -1.0
    %v37 = vadd.f32 %v35, -1.0
    %vm38 = vcmp.gt.f32.partialorder %v21, 2.0
    %vm39 = vcmp.gt.f32.partialorder %v22, 2.0
    %v40 = vsel %vm38, %v36, %v21
    %v41 = vsel %vm39, %v37, %v22
    %vm42 = vcmp.lt.f32.partialorder %v40, -1.0
    %vm43 = vcmp.lt.f32.partialorder %v41, -1.0
    %v44 = vsel %vm42, -1.0, %v40
    %v45 = vsel %vm43, -1.0, %v41
    %46 = vst [vmem:[#allocation5] sm:$0xff] %v44
    %47 = vst [vmem:[#allocation5 + $0x8] sm:$0xff] %v45
    // Predicated region
    $region10: #{tpu_custom_call.1} parent=1 // pred_check
      _
    $region11: #{tpu_custom_call.1} parent=1 // pred_check_branch
      %49 = sbr.rel (0) target = $region13
    $region12: #{tpu_custom_call.1} parent=1 // pred_region
      %s51 = ssub.s32 256, 256
      %52 = vsyncadd [#allocation4], %s51
      %s54 = sshll.u32 [#allocation5], 4
      %s55 = int_to_ptr.vmem [resolvable:$true] %s54
      %57 = dma.vmem_to_hbm [thread:$0]  %s55, 256, %s1, [#allocation4]
    $region13: #{tpu_custom_call.1} parent=1 // pred_fallthru
      _
    // Predicated region
    $region14: #{tpu_custom_call.1} parent=1 // pred_check
      _
    $region15: #{tpu_custom_call.1} parent=1 // pred_check_branch
      %59 = sbr.rel (0) target = $region17
    $region16: #{tpu_custom_call.1} parent=1 // pred_region
      %60 = dma.done [#allocation4], 256
    $region17: #{tpu_custom_call.1} parent=1 // pred_fallthru
      _
    %61 = vsyncpa [#allocation3], 1
    %62 = vsyncpa [#allocation4], 1

</llo_original>
